<compile_context>
chip_gen: v7x
topology: tpu7x:2x2x1
jax: 0.10.0
libtpu: 0.0.40
codegen_flags: <defaults>
</compile_context>

<pallas_src>
import math

import jax
import jax.numpy as jnp
from jax.experimental import pallas as pl
from jax.experimental.pallas import tpu as pltpu

LN_EPS = 1e-12                      # BERT default layer_norm_eps
VMEM_LIMIT = 48 * 1024 * 1024       # safe on v5e/v6e (128 MiB) and v7x (64 MiB)


def _round_up(x, m):
    return (x + m - 1) // m * m


# ---------- Stage 1: position-based attention + BertPredictionHeadTransform ----------

def _attn_transform_kernel(src_ref, hid_ref, mask_ref,
                           pos_ref, wt_ref, bt_ref, g_ref, be_ref,
                           t_ref):
    hid = hid_ref[0]                                              # (S, H) f32

    # pos_scores = pos_h @ seq_hidden^T, contracting H on both operands (no in-kernel
    # transpose of the hidden slab).
    pos_scores = jax.lax.dot_general(
        pos_ref[...], hid,
        dimension_numbers=(((1,), (1,)), ((), ())),
        preferred_element_type=jnp.float32)                       # (L, S)

    scores = pos_scores + src_ref[0].astype(jnp.float32)
    scores = scores + mask_ref[0].astype(jnp.float32) * (-10000.0)

    # numerically stable softmax over the sequence axis (kept in f32)
    m = jnp.max(scores, axis=-1, keepdims=True)
    e = jnp.exp(scores - m)
    alpha = e / jnp.sum(e, axis=-1, keepdims=True)                # (L, S)

    # attention-weighted summary on the MXU
    seq_sum = jnp.dot(alpha, hid, preferred_element_type=jnp.float32)   # (L, H)

    # BertPredictionHeadTransform: dense -> gelu (exact erf) -> LayerNorm
    t = jnp.dot(seq_sum, wt_ref[...], preferred_element_type=jnp.float32) + bt_ref[...]
    t = 0.5 * t * (1.0 + jax.lax.erf(t * (1.0 / math.sqrt(2.0))))
    mean = jnp.mean(t, axis=-1, keepdims=True)
    var = jnp.mean(jnp.square(t - mean), axis=-1, keepdims=True)
    t = (t - mean) * jax.lax.rsqrt(var + LN_EPS) * g_ref[...] + be_ref[...]

    t_ref[0] = t.astype(t_ref.dtype)                              # cast to stream dtype


# ---------- Stage 2: decoder GEMM, (M, H) @ (H, V_pad) with hiddens resident ----------

def _decoder_kernel(t_ref, wd_ref, bd_ref, out_ref):
    acc = jnp.dot(t_ref[...], wd_ref[...], preferred_element_type=jnp.float32)
    out_ref[...] = (acc + bd_ref[...]).astype(out_ref.dtype)


# ------------------------------- wrappers -------------------------------

def prepare_params(params, *, tv=512, stream_dtype=jnp.bfloat16):
    """One-time parameter prep, OUTSIDE the per-step forward: position projection,
    weight transposes, bf16 casts and vocab padding are done exactly once here."""
    assert tv % 128 == 0, "vocab tile must be lane-aligned (multiple of 128)"
    H = params["transform_w"].shape[0]
    V = params["decoder_w"].shape[0]
    V_pad = _round_up(V, tv)

    # pos_h for every position (forward statically slices [:L]); batch/vocab-invariant.
    pos_h_full = (params["pos_emb"] @ params["pos_proj_w"].T
                  + params["pos_proj_b"]).astype(jnp.float32)          # (max_pos, H)

    wd_t = params["decoder_w"].T.astype(stream_dtype)                  # (H, V) bf16
    wd_t = jnp.pad(wd_t, ((0, 0), (0, V_pad - V)))                     # (H, V_pad)
    bd = jnp.pad(params["decoder_b"].astype(jnp.float32),
                 (0, V_pad - V)).reshape(1, V_pad)

    return {
        "pos_h_full": pos_h_full,
        "transform_wt": params["transform_w"].T.astype(jnp.float32),   # (H, H)
        "transform_b": params["transform_b"].reshape(1, H).astype(jnp.float32),
        "gamma": params["gamma"].reshape(1, H).astype(jnp.float32),
        "beta": params["beta"].reshape(1, H).astype(jnp.float32),
        "decoder_wt": wd_t,                                            # (H, V_pad) bf16
        "decoder_b": bd,                                               # (1, V_pad) f32
        "vocab": V,
        "tv": tv,
        "stream_dtype": stream_dtype,
    }


def position_based_summary_for_mlm(src_scores, seq_hidden, seq_mask, prep, *, tm=512):
    """src_scores: [B,L,S], seq_hidden: [B,S,H], seq_mask: [B,S] -> [B,L,V] (f32)."""
    B, L, S = src_scores.shape
    assert seq_hidden.shape[0] == B and seq_hidden.shape[1] == S
    H = seq_hidden.shape[2]
    V, tv = prep["vocab"], prep["tv"]
    V_pad = prep["decoder_wt"].shape[1]
    stream_dtype = prep["stream_dtype"]

    pos_h = prep["pos_h_full"][:L]                 # (L, H), static slice
    mask3 = seq_mask.reshape(B, 1, S)

    # ---- Stage 1: per-batch attention + transform -> (B, L, H) in the stream dtype ----
    batch3 = lambda shape: pl.BlockSpec(shape, lambda b: (b, 0, 0))
    const2 = lambda shape: pl.BlockSpec(shape, lambda b: (0, 0))
    # Constant-index blocks are DMA'd once across the batch grid; pl.Buffered(1) would
    # also reclaim their spare buffer if VMEM ever became tight.

    t = pl.pallas_call(
        _attn_transform_kernel,
        out_shape=jax.ShapeDtypeStruct((B, L, H), stream_dtype),
        grid_spec=pltpu.PrefetchScalarGridSpec(
            num_scalar_prefetch=0,
            grid=(B,),
            in_specs=[
                batch3((1, L, S)),      # src_scores
                batch3((1, S, H)),      # seq_hidden (f32 — keeps softmax path accurate)
                batch3((1, 1, S)),      # seq_mask
                const2((L, H)),         # pos_h (precomputed)
                const2((H, H)),         # transform W^T
                const2((1, H)),         # transform b
                const2((1, H)),         # LN gamma
                const2((1, H)),         # LN beta
            ],
            out_specs=batch3((1, L, H)),
        ),
        compiler_params=pltpu.CompilerParams(
            dimension_semantics=("parallel",),
            vmem_limit_bytes=VMEM_LIMIT),
    )(src_scores, seq_hidden, mask3,
      pos_h, prep["transform_wt"], prep["transform_b"], prep["gamma"], prep["beta"])

    # ---- Stage 2: decoder GEMM. Flatten (B, L) -> M so decoder tiles are reused
    #      across the whole batch; hiddens stay VMEM-resident (few MiB in bf16). ----
    M = B * L
    if M <= tm:
        tm_eff = _round_up(M, 8)       # single m-tile, sublane aligned
        M_pad = tm_eff
    else:
        tm_eff = tm                    # weight tiles re-streamed once per m-tile
        M_pad = _round_up(M, tm_eff)

    t2 = t.reshape(M, H)
    if M_pad != M:
        t2 = jnp.pad(t2, ((0, M_pad - M), (0, 0)))

    logits = pl.pallas_call(
        _decoder_kernel,
        out_shape=jax.ShapeDtypeStruct((M_pad, V_pad), jnp.float32),
        grid_spec=pltpu.PrefetchScalarGridSpec(
            num_scalar_prefetch=0,
            grid=(M_pad // tm_eff, V_pad // tv),
            in_specs=[
                pl.BlockSpec((tm_eff, H), lambda i, j: (i, 0)),   # resident hiddens (bf16)
                pl.BlockSpec((H, tv), lambda i, j: (0, j)),       # decoder W^T tile (bf16)
                pl.BlockSpec((1, tv), lambda i, j: (0, j)),       # decoder bias tile (f32)
            ],
            out_specs=pl.BlockSpec((tm_eff, tv), lambda i, j: (i, j)),
        ),
        compiler_params=pltpu.CompilerParams(
            dimension_semantics=("parallel", "parallel"),         # vocab splittable on v7x megacore
            vmem_limit_bytes=VMEM_LIMIT),
    )(t2, prep["decoder_wt"], prep["decoder_b"])

    return logits[:M, :V].reshape(B, L, V)


# ------------------------------- reference & test -------------------------------

def _reference(src_scores, seq_hidden, seq_mask, params):
    """Plain-JAX f32 reference mirroring the PyTorch forward (dropout = identity)."""
    B, L, S = src_scores.shape
    pos_h = params["pos_emb"][:L] @ params["pos_proj_w"].T + params["pos_proj_b"]
    pos_scores = jnp.einsum("lh,bsh->bls", pos_h, seq_hidden)
    scores = pos_scores + src_scores + seq_mask[:, None, :] * (-10000.0)
    alpha = jax.nn.softmax(scores, axis=-1)
    seq_sum = jnp.einsum("bls,bsh->blh", alpha, seq_hidden)
    t = seq_sum @ params["transform_w"].T + params["transform_b"]
    t = 0.5 * t * (1.0 + jax.lax.erf(t / math.sqrt(2.0)))
    mean = jnp.mean(t, axis=-1, keepdims=True)
    var = jnp.mean((t - mean) ** 2, axis=-1, keepdims=True)
    t = (t - mean) / jnp.sqrt(var + LN_EPS) * params["gamma"] + params["beta"]
    return t @ params["decoder_w"].T + params["decoder_b"]


def init_params(key, *, hidden, pos_dim, vocab, max_pos):
    ks = jax.random.split(key, 5)
    std = 0.02
    return {
        "pos_emb": std * jax.random.normal(ks[0], (max_pos, pos_dim), jnp.float32),
        "pos_proj_w": std * jax.random.normal(ks[1], (hidden, pos_dim), jnp.float32),
        "pos_proj_b": jnp.full((hidden,), 0.01, jnp.float32),
        "transform_w": std * jax.random.normal(ks[2], (hidden, hidden), jnp.float32),
        "transform_b": jnp.full((hidden,), -0.01, jnp.float32),
        "gamma": jnp.ones((hidden,), jnp.float32),
        "beta": jnp.zeros((hidden,), jnp.float32),
        "decoder_w": std * jax.random.normal(ks[3], (vocab, hidden), jnp.float32),
        "decoder_b": 0.01 * jax.random.normal(ks[4], (vocab,), jnp.float32),
    }


if __name__ == "__main__":
    # small shapes: batch=2, seq_len=8, hidden=32, pos_emb_dim=16, vocab=512
    B, L, S, H, P, V = 2, 8, 8, 32, 16, 512
    MAX_POS = 64

    root = jax.random.PRNGKey(0)
    k_src, k_hid, k_mask, k_par = jax.random.split(root, 4)
    src_scores = jax.random.normal(k_src, (B, L, S), jnp.float32)
    seq_hidden = jax.random.normal(k_hid, (B, S, H), jnp.float32)
    seq_mask = (jax.random.uniform(k_mask, (B, S)) > 0.75).astype(jnp.float32)
    params = init_params(k_par, hidden=H, pos_dim=P, vocab=V, max_pos=MAX_POS)

    # One-time prep (transposes / bf16 casts / vocab padding) — not part of the hot path.
    prep = prepare_params(params, tv=512, stream_dtype=jnp.bfloat16)

    out = position_based_summary_for_mlm(src_scores, seq_hidden, seq_mask, prep)
    jax.block_until_ready(out)

    ref = _reference(src_scores, seq_hidden, seq_mask, params)
    assert out.shape == (B, L, V)
    # Tolerance accounts for bf16 streaming of the decoder weight / transformed hiddens
    # (softmax / LayerNorm / accumulation remain f32).
    assert jnp.allclose(out, ref, atol=2e-3, rtol=2e-3)

    print("KERNEL_OK")
</pallas_src>

<mosaic_0001>
module attributes {stable_mosaic.version = 11 : i64} {
  func.func @_attn_transform_kernel(%arg0: i32, %arg1: memref<1x8x8xf32, #tpu.memory_space<vmem>>, %arg2: memref<1x8x32xf32, #tpu.memory_space<vmem>>, %arg3: memref<1x1x8xf32, #tpu.memory_space<vmem>>, %arg4: memref<8x32xf32, #tpu.memory_space<vmem>>, %arg5: memref<32x32xf32, #tpu.memory_space<vmem>>, %arg6: memref<1x32xf32, #tpu.memory_space<vmem>>, %arg7: memref<1x32xf32, #tpu.memory_space<vmem>>, %arg8: memref<1x32xf32, #tpu.memory_space<vmem>>, %arg9: memref<1x8x32xbf16, #tpu.memory_space<vmem>>) attributes {dimension_semantics = [#tpu.dimension_semantics<parallel>], iteration_bounds = array<i64: 2>, scalar_prefetch = 0 : i64, scratch_operands = 0 : i64, tpu.core_type = #tpu.core_type<tc>, window_params = [{transform_indices = @transform_0, window_bounds = array<i64: 1, 8, 8>}, {transform_indices = @transform_1, window_bounds = array<i64: 1, 8, 32>}, {transform_indices = @transform_2, window_bounds = array<i64: 1, 1, 8>}, {pipeline_mode = #tpu.pipeline_mode<synchronous>, transform_indices = @transform_3, window_bounds = array<i64: 8, 32>}, {pipeline_mode = #tpu.pipeline_mode<synchronous>, transform_indices = @transform_4, window_bounds = array<i64: 32, 32>}, {pipeline_mode = #tpu.pipeline_mode<synchronous>, transform_indices = @transform_5, window_bounds = array<i64: 1, 32>}, {pipeline_mode = #tpu.pipeline_mode<synchronous>, transform_indices = @transform_6, window_bounds = array<i64: 1, 32>}, {pipeline_mode = #tpu.pipeline_mode<synchronous>, transform_indices = @transform_7, window_bounds = array<i64: 1, 32>}, {transform_indices = @transform_8, window_bounds = array<i64: 1, 8, 32>}]} {
    %c0 = arith.constant 0 : index
    %c0_0 = arith.constant 0 : index
    %c0_1 = arith.constant 0 : index
    %0 = vector.load %arg2[%c0, %c0_0, %c0_1] : memref<1x8x32xf32, #tpu.memory_space<vmem>>, vector<1x8x32xf32>
    %1 = vector.shape_cast %0 : vector<1x8x32xf32> to vector<8x32xf32>
    %c0_2 = arith.constant 0 : index
    %c0_3 = arith.constant 0 : index
    %2 = vector.load %arg4[%c0_2, %c0_3] : memref<8x32xf32, #tpu.memory_space<vmem>>, vector<8x32xf32>
    %cst = arith.constant dense<0.000000e+00> : vector<8x8xf32>
    %3 = tpu.matmul %2, %1, %cst {dimension_numbers = #tpu.dot_dimension_numbers<[1], [1], [0], [0], [0, 0, 1, 0], [], []>} : vector<8x32xf32>, vector<8x32xf32>, vector<8x8xf32> -> vector<8x8xf32>
    %c0_4 = arith.constant 0 : index
    %c0_5 = arith.constant 0 : index
    %c0_6 = arith.constant 0 : index
    %4 = vector.load %arg1[%c0_4, %c0_5, %c0_6] : memref<1x8x8xf32, #tpu.memory_space<vmem>>, vector<1x8x8xf32>
    %5 = vector.shape_cast %4 : vector<1x8x8xf32> to vector<8x8xf32>
    %6 = arith.addf %3, %5 : vector<8x8xf32>
    %c0_7 = arith.constant 0 : index
    %c0_8 = arith.constant 0 : index
    %c0_9 = arith.constant 0 : index
    %7 = vector.load %arg3[%c0_7, %c0_8, %c0_9] : memref<1x1x8xf32, #tpu.memory_space<vmem>>, vector<1x1x8xf32>
    %8 = vector.shape_cast %7 : vector<1x1x8xf32> to vector<1x8xf32>
    %cst_10 = arith.constant -1.000000e+04 : f32
    %9 = vector.broadcast %cst_10 : f32 to vector<1x8xf32>
    %10 = arith.mulf %8, %9 : vector<1x8xf32>
    %11 = vector.broadcast %10 : vector<1x8xf32> to vector<8x8xf32>
    %12 = arith.addf %6, %11 : vector<8x8xf32>
    %cst_11 = arith.constant dense<0xFF800000> : vector<8xf32>
    %13 = vector.multi_reduction <maximumf>, %12, %cst_11 [1] : vector<8x8xf32> to vector<8xf32>
    %14 = vector.shape_cast %13 : vector<8xf32> to vector<8x1xf32>
    %15 = vector.broadcast %14 : vector<8x1xf32> to vector<8x8xf32>
    %16 = arith.subf %12, %15 : vector<8x8xf32>
    %17 = math.exp %16 : vector<8x8xf32>
    %cst_12 = arith.constant dense<0.000000e+00> : vector<8xf32>
    %18 = vector.multi_reduction <add>, %17, %cst_12 [1] : vector<8x8xf32> to vector<8xf32>
    %19 = vector.shape_cast %18 : vector<8xf32> to vector<8x1xf32>
    %20 = vector.broadcast %19 : vector<8x1xf32> to vector<8x8xf32>
    %21 = arith.divf %17, %20 : vector<8x8xf32>
    %cst_13 = arith.constant dense<0.000000e+00> : vector<8x32xf32>
    %22 = tpu.matmul %21, %1, %cst_13 {dimension_numbers = #tpu.dot_dimension_numbers<[1], [0], [0], [1], [0, 0, 1, 1], [], []>} : vector<8x8xf32>, vector<8x32xf32>, vector<8x32xf32> -> vector<8x32xf32>
    %c0_14 = arith.constant 0 : index
    %c0_15 = arith.constant 0 : index
    %23 = vector.load %arg5[%c0_14, %c0_15] : memref<32x32xf32, #tpu.memory_space<vmem>>, vector<32x32xf32>
    %cst_16 = arith.constant dense<0.000000e+00> : vector<8x32xf32>
    %24 = tpu.matmul %22, %23, %cst_16 {dimension_numbers = #tpu.dot_dimension_numbers<[1], [0], [0], [1], [0, 0, 1, 1], [], []>} : vector<8x32xf32>, vector<32x32xf32>, vector<8x32xf32> -> vector<8x32xf32>
    %c0_17 = arith.constant 0 : index
    %c0_18 = arith.constant 0 : index
    %25 = vector.load %arg6[%c0_17, %c0_18] : memref<1x32xf32, #tpu.memory_space<vmem>>, vector<1x32xf32>
    %26 = vector.broadcast %25 : vector<1x32xf32> to vector<8x32xf32>
    %27 = arith.addf %24, %26 : vector<8x32xf32>
    %cst_19 = arith.constant 5.000000e-01 : f32
    %28 = vector.broadcast %cst_19 : f32 to vector<8x32xf32>
    %29 = arith.mulf %28, %27 : vector<8x32xf32>
    %cst_20 = arith.constant 0.707106769 : f32
    %30 = vector.broadcast %cst_20 : f32 to vector<8x32xf32>
    %31 = arith.mulf %27, %30 : vector<8x32xf32>
    %32 = math.erf %31 : vector<8x32xf32>
    %cst_21 = arith.constant 1.000000e+00 : f32
    %33 = vector.broadcast %cst_21 : f32 to vector<8x32xf32>
    %34 = arith.addf %33, %32 : vector<8x32xf32>
    %35 = arith.mulf %29, %34 : vector<8x32xf32>
    %cst_22 = arith.constant dense<0.000000e+00> : vector<8xf32>
    %36 = vector.multi_reduction <add>, %35, %cst_22 [1] : vector<8x32xf32> to vector<8xf32>
    %37 = vector.shape_cast %36 : vector<8xf32> to vector<8x1xf32>
    %cst_23 = arith.constant 3.200000e+01 : f32
    %38 = vector.broadcast %cst_23 : f32 to vector<8x1xf32>
    %39 = arith.divf %37, %38 : vector<8x1xf32>
    %40 = vector.broadcast %39 : vector<8x1xf32> to vector<8x32xf32>
    %41 = arith.subf %35, %40 : vector<8x32xf32>
    %42 = arith.mulf %41, %41 : vector<8x32xf32>
    %cst_24 = arith.constant dense<0.000000e+00> : vector<8xf32>
    %43 = vector.multi_reduction <add>, %42, %cst_24 [1] : vector<8x32xf32> to vector<8xf32>
    %44 = vector.shape_cast %43 : vector<8xf32> to vector<8x1xf32>
    %cst_25 = arith.constant 3.200000e+01 : f32
    %45 = vector.broadcast %cst_25 : f32 to vector<8x1xf32>
    %46 = arith.divf %44, %45 : vector<8x1xf32>
    %47 = vector.broadcast %39 : vector<8x1xf32> to vector<8x32xf32>
    %48 = arith.subf %35, %47 : vector<8x32xf32>
    %cst_26 = arith.constant 9.99999996E-13 : f32
    %49 = vector.broadcast %cst_26 : f32 to vector<8x1xf32>
    %50 = arith.addf %46, %49 : vector<8x1xf32>
    %51 = math.rsqrt %50 : vector<8x1xf32>
    %52 = vector.broadcast %51 : vector<8x1xf32> to vector<8x32xf32>
    %53 = arith.mulf %48, %52 : vector<8x32xf32>
    %c0_27 = arith.constant 0 : index
    %c0_28 = arith.constant 0 : index
    %54 = vector.load %arg7[%c0_27, %c0_28] : memref<1x32xf32, #tpu.memory_space<vmem>>, vector<1x32xf32>
    %55 = vector.broadcast %54 : vector<1x32xf32> to vector<8x32xf32>
    %56 = arith.mulf %53, %55 : vector<8x32xf32>
    %c0_29 = arith.constant 0 : index
    %c0_30 = arith.constant 0 : index
    %57 = vector.load %arg8[%c0_29, %c0_30] : memref<1x32xf32, #tpu.memory_space<vmem>>, vector<1x32xf32>
    %58 = vector.broadcast %57 : vector<1x32xf32> to vector<8x32xf32>
    %59 = arith.addf %56, %58 : vector<8x32xf32>
    %60 = arith.truncf %59 : vector<8x32xf32> to vector<8x32xbf16>
    %c0_31 = arith.constant 0 : index
    %c0_32 = arith.constant 0 : index
    %c0_33 = arith.constant 0 : index
    %61 = vector.load %arg9[%c0_31, %c0_32, %c0_33] : memref<1x8x32xbf16, #tpu.memory_space<vmem>>, vector<1x8x32xbf16>
    %62 = vector.shape_cast %61 : vector<1x8x32xbf16> to vector<8x32xbf16>
    %63 = vector.shape_cast %60 : vector<8x32xbf16> to vector<1x8x32xbf16>
    tpu.vector_store %arg9[%c0_31, %c0_32, %c0_33], %63 {strides = array<i32>} : memref<1x8x32xbf16, #tpu.memory_space<vmem>>, vector<1x8x32xbf16>,
    return
  }
  func.func @transform_0(%arg0: i32) -> (i32, i32, i32) {
    %c0_i32 = arith.constant 0 : i32
    %c0_i32_0 = arith.constant 0 : i32
    %c0_i32_1 = arith.constant 0 : i32
    return %arg0, %c0_i32, %c0_i32_0 : i32, i32, i32
  }
  func.func @transform_1(%arg0: i32) -> (i32, i32, i32) {
    %c0_i32 = arith.constant 0 : i32
    %c0_i32_0 = arith.constant 0 : i32
    %c0_i32_1 = arith.constant 0 : i32
    return %arg0, %c0_i32, %c0_i32_0 : i32, i32, i32
  }
  func.func @transform_2(%arg0: i32) -> (i32, i32, i32) {
    %c0_i32 = arith.constant 0 : i32
    %c0_i32_0 = arith.constant 0 : i32
    %c0_i32_1 = arith.constant 0 : i32
    return %arg0, %c0_i32, %c0_i32_0 : i32, i32, i32
  }
  func.func @transform_3(%arg0: i32) -> (i32, i32) {
    %c0_i32 = arith.constant 0 : i32
    %c0_i32_0 = arith.constant 0 : i32
    %c0_i32_1 = arith.constant 0 : i32
    return %c0_i32, %c0_i32_0 : i32, i32
  }
  func.func @transform_4(%arg0: i32) -> (i32, i32) {
    %c0_i32 = arith.constant 0 : i32
    %c0_i32_0 = arith.constant 0 : i32
    %c0_i32_1 = arith.constant 0 : i32
    return %c0_i32, %c0_i32_0 : i32, i32
  }
  func.func @transform_5(%arg0: i32) -> (i32, i32) {
    %c0_i32 = arith.constant 0 : i32
    %c0_i32_0 = arith.constant 0 : i32
    %c0_i32_1 = arith.constant 0 : i32
    return %c0_i32, %c0_i32_0 : i32, i32
  }
  func.func @transform_6(%arg0: i32) -> (i32, i32) {
    %c0_i32 = arith.constant 0 : i32
    %c0_i32_0 = arith.constant 0 : i32
    %c0_i32_1 = arith.constant 0 : i32
    return %c0_i32, %c0_i32_0 : i32, i32
  }
  func.func @transform_7(%arg0: i32) -> (i32, i32) {
    %c0_i32 = arith.constant 0 : i32
    %c0_i32_0 = arith.constant 0 : i32
    %c0_i32_1 = arith.constant 0 : i32
    return %c0_i32, %c0_i32_0 : i32, i32
  }
  func.func @transform_8(%arg0: i32) -> (i32, i32, i32) {
    %c0_i32 = arith.constant 0 : i32
    %c0_i32_0 = arith.constant 0 : i32
    %c0_i32_1 = arith.constant 0 : i32
    return %arg0, %c0_i32, %c0_i32_0 : i32, i32, i32
  }
}

</mosaic_0001>

<llo_original>
// kernel: tpu_custom_call.1
$region0: #{tpu_custom_call.1}
  #allocation0 [shape = 'u32[]', space=smem, size = 0x4, offset = 0x4, fixed_abs, tag = 'smem constant byte address 0x4 - core index']
  #allocation1 [shape = 'u32[144,128]{1,0:T(1,128)}', space=vmem, size = 0x12000, scoped, tag = 'internal scratch']
  %s0 = inlined_call_operand.hbm [shape: f32[2,8,8], index: 0, kind: input, shape index: {}]
  %s1 = inlined_call_operand.hbm [shape: f32[2,8,32], index: 1, kind: input, shape index: {}]
  %s2 = inlined_call_operand.vmem [shape: f32[2,1,8], index: 2, kind: input, shape index: {}]
  %s3 = inlined_call_operand.vmem [shape: f32[8,32], index: 3, kind: input, shape index: {}]
  %s4 = inlined_call_operand.hbm [shape: f32[32,32], index: 4, kind: input, shape index: {}]
  %s5 = inlined_call_operand.vmem [shape: f32[1,32], index: 5, kind: input, shape index: {}]
  %s6 = inlined_call_operand.vmem [shape: f32[1,32], index: 6, kind: input, shape index: {}]
  %s7 = inlined_call_operand.vmem [shape: f32[1,32], index: 7, kind: input, shape index: {}]
  %s8 = inlined_call_operand.hbm [shape: bf16[2,8,32], index: 8, kind: output, shape index: {}]
  %s9 = sld [smem:[#allocation0]]
  $region77: #{tpu_custom_call.1} parent=0
    _
  %s11 = ssub.s32 1, %s9
  %s12 = scalar_select 0, %s11, %s9
  $region1: #{tpu_custom_call.1} parent=0
    #allocation2 [shape = 'u8[8192]{0}', space=vmem, size = 0x2000, scoped, tag = 'input window, operand 0']
    #allocation3 [shape = 's32[2]{0}', space=sflag, size = 0x8, scoped, tag = 'scoped memory for tpu_custom_call.1']
    #allocation4 [shape = 's32[2]{0}', space=sflag, size = 0x8, scoped, tag = 'scoped memory for tpu_custom_call.1']
    #allocation5 [shape = 'u8[8192]{0}', space=vmem, size = 0x2000, scoped, tag = 'input window, operand 1']
    #allocation6 [shape = 's32[2]{0}', space=sflag, size = 0x8, scoped, tag = 'scoped memory for tpu_custom_call.1']
    #allocation7 [shape = 'u8[16384]{0}', space=vmem, size = 0x4000, scoped, tag = 'input window, operand 4, single buffered']
    #allocation8 [shape = 'u8[4096]{0}', space=vmem, size = 0x1000, scoped, tag = 'output window, operand 0']
    %13 = vsyncpa [#allocation3], 0
    %s14 = scalar_lea.sflag [#allocation3], 1
    %15 = vsyncpa %s14, 0
    %16 = vsyncpa [#allocation6], 0
    %s17 = scalar_lea.sflag [#allocation6], 1
    %18 = vsyncpa %s17, 0
    %19 = vsyncpa [#allocation4], 0
    %s20 = scalar_lea.sflag [#allocation4], 1
    %21 = vsyncpa %s20, 0
    loop: start=0, step=1, limit=4
    $region2: #{tpu_custom_call.1} parent=1 // loop_pre_header
      _
    $region3: #{tpu_custom_call.1} parent=1 // loop_header
      %s23 = sphi 0, %s27
      %p24 = scmp.ge.s32.totalorder %s23, 4
      %s33 = sphi 0, %s35
      %s36 = sphi 0, %s33
      %s37 = sphi 0, %s36
      %s53 = sphi 0, %s37
      %s59 = sphi 0, %s61
      %s62 = sphi 0, %s59
      %s63 = sphi 0, %s62
      %s79 = sphi 0, %s63
      %s85 = sphi 0, %s87
      %s88 = sphi 0, %s85
      %s89 = sphi 0, %s88
      %s105 = sphi 0, %s89
      %s109 = sphi 0, %s109
      %s111 = sphi 0, %s109
      %s112 = sphi 0, %s111
      %s126 = sphi 0, %s112
      %s130 = sphi 0, %s130
      %s132 = sphi 0, %s130
      %s133 = sphi 0, %s132
      %s147 = sphi 0, %s133
      %s151 = sphi 0, %s151
      %s153 = sphi 0, %s151
      %s154 = sphi 0, %s153
      %s168 = sphi 0, %s154
      %s172 = sphi 0, %s172
      %s174 = sphi 0, %s172
      %s175 = sphi 0, %s174
      %s189 = sphi 0, %s175
      %s193 = sphi 0, %s193
      %s195 = sphi 0, %s193
      %s196 = sphi 0, %s195
      %s210 = sphi 0, %s196
      %s216 = sphi 0, %s218
      %s219 = sphi 0, %s216
      %s220 = sphi 0, %s219
      %s236 = sphi 0, %s220
    $region4: #{tpu_custom_call.1} parent=1 // loop_header_branch
      %26 = sbr.rel (%p24) target = $region8
    $region5: #{tpu_custom_call.1} parent=1 // loop_body
      %s28 = ssub.s32 %s23, 1
      %s29 = ssub.s32 %s23, 2
      %s30 = sadd.s32 %s23, 1
      %s31 = ssub.s32 %s23, %s30
      %p32 = scmp.eq.s32.totalorder %s31, 0
      %s34 = sadd.s32 %s33, 1
      %s35 = scalar_select %p32, %s33, %s34
      %p38 = pneg %p32
      %p39 = scmp.eq.s32.totalorder %s23, 1
      %p40 = por %p38, %p39
      %p41 = scmp.ne.s32.totalorder %s33, %s36
      %p42 = scmp.eq.s32.totalorder %s23, 0
      %p43 = por %p41, %p42
      %p44 = scmp.ne.s32.totalorder %s33, %s36
      %p45 = scmp.eq.s32.totalorder %s28, 1
      %p46 = por %p44, %p45
      %p47 = scmp.ne.s32.totalorder %s36, %s37
      %p48 = scmp.eq.s32.totalorder %s28, 0
      %p49 = por %p47, %p48
      %p50 = scmp.ne.s32.totalorder %s36, %s37
      %p51 = scmp.eq.s32.totalorder %s29, 1
      %p52 = por %p50, %p51
      %p54 = scmp.ne.s32.totalorder %s37, %s53
      %p55 = scmp.eq.s32.totalorder %s29, 0
      %p56 = por %p54, %p55
      %s57 = ssub.s32 %s23, %s30
      %p58 = scmp.eq.s32.totalorder %s57, 0
      %s60 = sadd.s32 %s59, 1
      %s61 = scalar_select %p58, %s59, %s60
      %p64 = pneg %p58
      %p65 = scmp.eq.s32.totalorder %s23, 1
      %p66 = por %p64, %p65
      %p67 = scmp.ne.s32.totalorder %s59, %s62
      %p68 = scmp.eq.s32.totalorder %s23, 0
      %p69 = por %p67, %p68
      %p70 = scmp.ne.s32.totalorder %s59, %s62
      %p71 = scmp.eq.s32.totalorder %s28, 1
      %p72 = por %p70, %p71
      %p73 = scmp.ne.s32.totalorder %s62, %s63
      %p74 = scmp.eq.s32.totalorder %s28, 0
      %p75 = por %p73, %p74
      %p76 = scmp.ne.s32.totalorder %s62, %s63
      %p77 = scmp.eq.s32.totalorder %s29, 1
      %p78 = por %p76, %p77
      %p80 = scmp.ne.s32.totalorder %s63, %s79
      %p81 = scmp.eq.s32.totalorder %s29, 0
      %p82 = por %p80, %p81
      %s83 = ssub.s32 %s23, %s30
      %p84 = scmp.eq.s32.totalorder %s83, 0
      %s86 = sadd.s32 %s85, 1
      %s87 = scalar_select %p84, %s85, %s86
      %p90 = pneg %p84
      %p91 = scmp.eq.s32.totalorder %s23, 1
      %p92 = por %p90, %p91
      %p93 = scmp.ne.s32.totalorder %s85, %s88
      %p94 = scmp.eq.s32.totalorder %s23, 0
      %p95 = por %p93, %p94
      %p96 = scmp.ne.s32.totalorder %s85, %s88
      %p97 = scmp.eq.s32.totalorder %s28, 1
      %p98 = por %p96, %p97
      %p99 = scmp.ne.s32.totalorder %s88, %s89
      %p100 = scmp.eq.s32.totalorder %s28, 0
      %p101 = por %p99, %p100
      %p102 = scmp.ne.s32.totalorder %s88, %s89
      %p103 = scmp.eq.s32.totalorder %s29, 1
      %p104 = por %p102, %p103
      %p106 = scmp.ne.s32.totalorder %s89, %s105
      %p107 = scmp.eq.s32.totalorder %s29, 0
      %p108 = por %p106, %p107
      %s110 = sadd.s32 %s109, 1
      %p113 = scmp.eq.s32.totalorder %s23, 1
      %p114 = scmp.ne.s32.totalorder %s109, %s111
      %p115 = scmp.eq.s32.totalorder %s23, 0
      %p116 = por %p114, %p115
      %p117 = scmp.ne.s32.totalorder %s109, %s111
      %p118 = scmp.eq.s32.totalorder %s28, 1
      %p119 = por %p117, %p118
      %p120 = scmp.ne.s32.totalorder %s111, %s112
      %p121 = scmp.eq.s32.totalorder %s28, 0
      %p122 = por %p120, %p121
      %p123 = scmp.ne.s32.totalorder %s111, %s112
      %p124 = scmp.eq.s32.totalorder %s29, 1
      %p125 = por %p123, %p124
      %p127 = scmp.ne.s32.totalorder %s112, %s126
      %p128 = scmp.eq.s32.totalorder %s29, 0
      %p129 = por %p127, %p128
      %s131 = sadd.s32 %s130, 1
      %p134 = scmp.eq.s32.totalorder %s23, 1
      %p135 = scmp.ne.s32.totalorder %s130, %s132
      %p136 = scmp.eq.s32.totalorder %s23, 0
      %p137 = por %p135, %p136
      %p138 = scmp.ne.s32.totalorder %s130, %s132
      %p139 = scmp.eq.s32.totalorder %s28, 1
      %p140 = por %p138, %p139
      %p141 = scmp.ne.s32.totalorder %s132, %s133
      %p142 = scmp.eq.s32.totalorder %s28, 0
      %p143 = por %p141, %p142
      %p144 = scmp.ne.s32.totalorder %s132, %s133
      %p145 = scmp.eq.s32.totalorder %s29, 1
      %p146 = por %p144, %p145
      %p148 = scmp.ne.s32.totalorder %s133, %s147
      %p149 = scmp.eq.s32.totalorder %s29, 0
      %p150 = por %p148, %p149
      %s152 = sadd.s32 %s151, 1
      %p155 = scmp.eq.s32.totalorder %s23, 1
      %p156 = scmp.ne.s32.totalorder %s151, %s153
      %p157 = scmp.eq.s32.totalorder %s23, 0
      %p158 = por %p156, %p157
      %p159 = scmp.ne.s32.totalorder %s151, %s153
      %p160 = scmp.eq.s32.totalorder %s28, 1
      %p161 = por %p159, %p160
      %p162 = scmp.ne.s32.totalorder %s153, %s154
      %p163 = scmp.eq.s32.totalorder %s28, 0
      %p164 = por %p162, %p163
      %p165 = scmp.ne.s32.totalorder %s153, %s154
      %p166 = scmp.eq.s32.totalorder %s29, 1
      %p167 = por %p165, %p166
      %p169 = scmp.ne.s32.totalorder %s154, %s168
      %p170 = scmp.eq.s32.totalorder %s29, 0
      %p171 = por %p169, %p170
      %s173 = sadd.s32 %s172, 1
      %p176 = scmp.eq.s32.totalorder %s23, 1
      %p177 = scmp.ne.s32.totalorder %s172, %s174
      %p178 = scmp.eq.s32.totalorder %s23, 0
      %p179 = por %p177, %p178
      %p180 = scmp.ne.s32.totalorder %s172, %s174
      %p181 = scmp.eq.s32.totalorder %s28, 1
      %p182 = por %p180, %p181
      %p183 = scmp.ne.s32.totalorder %s174, %s175
      %p184 = scmp.eq.s32.totalorder %s28, 0
      %p185 = por %p183, %p184
      %p186 = scmp.ne.s32.totalorder %s174, %s175
      %p187 = scmp.eq.s32.totalorder %s29, 1
      %p188 = por %p186, %p187
      %p190 = scmp.ne.s32.totalorder %s175, %s189
      %p191 = scmp.eq.s32.totalorder %s29, 0
      %p192 = por %p190, %p191
      %s194 = sadd.s32 %s193, 1
      %p197 = scmp.eq.s32.totalorder %s23, 1
      %p198 = scmp.ne.s32.totalorder %s193, %s195
      %p199 = scmp.eq.s32.totalorder %s23, 0
      %p200 = por %p198, %p199
      %p201 = scmp.ne.s32.totalorder %s193, %s195
      %p202 = scmp.eq.s32.totalorder %s28, 1
      %p203 = por %p201, %p202
      %p204 = scmp.ne.s32.totalorder %s195, %s196
      %p205 = scmp.eq.s32.totalorder %s28, 0
      %p206 = por %p204, %p205
      %p207 = scmp.ne.s32.totalorder %s195, %s196
      %p208 = scmp.eq.s32.totalorder %s29, 1
      %p209 = por %p207, %p208
      %p211 = scmp.ne.s32.totalorder %s196, %s210
      %p212 = scmp.eq.s32.totalorder %s29, 0
      %p213 = por %p211, %p212
      %s214 = ssub.s32 %s23, %s30
      %p215 = scmp.eq.s32.totalorder %s214, 0
      %s217 = sadd.s32 %s216, 1
      %s218 = scalar_select %p215, %s216, %s217
      %p221 = pneg %p215
      %p222 = scmp.eq.s32.totalorder %s23, 1
      %p223 = por %p221, %p222
      %p224 = scmp.ne.s32.totalorder %s216, %s219
      %p225 = scmp.eq.s32.totalorder %s23, 0
      %p226 = por %p224, %p225
      %p227 = scmp.ne.s32.totalorder %s216, %s219
      %p228 = scmp.eq.s32.totalorder %s28, 1
      %p229 = por %p227, %p228
      %p230 = scmp.ne.s32.totalorder %s219, %s220
      %p231 = scmp.eq.s32.totalorder %s28, 0
      %p232 = por %p230, %p231
      %p233 = scmp.ne.s32.totalorder %s219, %s220
      %p234 = scmp.eq.s32.totalorder %s29, 1
      %p235 = por %p233, %p234
      %p237 = scmp.ne.s32.totalorder %s220, %s236
      %p238 = scmp.eq.s32.totalorder %s29, 0
      %p239 = por %p237, %p238
      %p240 = scmp.le.s32.totalorder 1, %s23
      %p241 = scmp.lt.s32.totalorder %s23, 3
      %p242 = pnand %p240, %p241
      %p243 = pneg %p242
      // Predicated region
      $region9: #{tpu_custom_call.1} parent=5 // pred_check
        _
      $region10: #{tpu_custom_call.1} parent=5 // pred_check_branch
        %245 = sbr.rel (%p242) target = $region12
      $region11: #{tpu_custom_call.1} parent=5 // pred_region
        %s246 = ssub.s32 %s23, 1
        // Predicated region
        $region13: #{tpu_custom_call.1} parent=11 // pred_check
          %p247 = pneg %p122
        $region14: #{tpu_custom_call.1} parent=11 // pred_check_branch
          %249 = sbr.rel (%p247) target = $region16
        $region15: #{tpu_custom_call.1} parent=11 // pred_region
          _
        $region16: #{tpu_custom_call.1} parent=11 // pred_fallthru
          _
        // Predicated region
        $region17: #{tpu_custom_call.1} parent=11 // pred_check
          %p250 = pneg %p143
        $region18: #{tpu_custom_call.1} parent=11 // pred_check_branch
          %252 = sbr.rel (%p250) target = $region20
        $region19: #{tpu_custom_call.1} parent=11 // pred_region
          %s254 = ssub.s32 512, 512
          %255 = vsyncadd [#allocation6], %s254
          %s256 = sshll.u32 [#allocation7], 4
          %s257 = int_to_ptr.vmem [resolvable:$true] %s256
          %262 = dma.hbm_to_vmem [thread:$0]  %s4, 512, %s257, [#allocation6], 128, 128, 8
        $region20: #{tpu_custom_call.1} parent=11 // pred_fallthru
          _
        // Predicated region
        $region21: #{tpu_custom_call.1} parent=11 // pred_check
          %p263 = pneg %p164
        $region22: #{tpu_custom_call.1} parent=11 // pred_check_branch
          %265 = sbr.rel (%p263) target = $region24
        $region23: #{tpu_custom_call.1} parent=11 // pred_region
          _
        $region24: #{tpu_custom_call.1} parent=11 // pred_fallthru
          _
        // Predicated region
        $region25: #{tpu_custom_call.1} parent=11 // pred_check
          %p266 = pneg %p185
        $region26: #{tpu_custom_call.1} parent=11 // pred_check_branch
          %268 = sbr.rel (%p266) target = $region28
        $region27: #{tpu_custom_call.1} parent=11 // pred_region
          _
        $region28: #{tpu_custom_call.1} parent=11 // pred_fallthru
          _
        // Predicated region
        $region29: #{tpu_custom_call.1} parent=11 // pred_check
          %p269 = pneg %p206
        $region30: #{tpu_custom_call.1} parent=11 // pred_check_branch
          %271 = sbr.rel (%p269) target = $region32
        $region31: #{tpu_custom_call.1} parent=11 // pred_region
          _
        $region32: #{tpu_custom_call.1} parent=11 // pred_fallthru
          _
      $region12: #{tpu_custom_call.1} parent=5 // pred_fallthru
        _
      %p272 = scmp.lt.s32.totalorder %s23, 2
      // Predicated region
      $region33: #{tpu_custom_call.1} parent=5 // pred_check
        %p273 = pneg %p272
      $region34: #{tpu_custom_call.1} parent=5 // pred_check_branch
        %275 = sbr.rel (%p273) target = $region36
      $region35: #{tpu_custom_call.1} parent=5 // pred_region
        // Predicated region
        $region37: #{tpu_custom_call.1} parent=35 // pred_check
          %p276 = pneg %p43
        $region38: #{tpu_custom_call.1} parent=35 // pred_check_branch
          %278 = sbr.rel (%p276) target = $region40
        $region39: #{tpu_custom_call.1} parent=35 // pred_region
          %s279 = sand.u32 %s33, 1
          %s280 = scalar_lea.sflag [#allocation3], %s279
          %s281 = sand.u32 %s33, 1
          %s282 = smul.addr %s281, 8
          %s283 = scalar_lea.vmem [#allocation2], %s282
          %s285 = ssub.s32 128, 128
          %286 = vsyncadd %s280, %s285
          %s287 = smul.addr %s23, 128
          %s288 = scalar_lea.hbm %s0, %s287
          %s290 = sshll.u32 %s283, 4
          %s291 = int_to_ptr.vmem [resolvable:$true] %s290
          %293 = dma.hbm_to_vmem [thread:$0]  %s288, 128, %s291, %s280
        $region40: #{tpu_custom_call.1} parent=35 // pred_fallthru
          _
        // Predicated region
        $region41: #{tpu_custom_call.1} parent=35 // pred_check
          %p294 = pneg %p69
        $region42: #{tpu_custom_call.1} parent=35 // pred_check_branch
          %296 = sbr.rel (%p294) target = $region44
        $region43: #{tpu_custom_call.1} parent=35 // pred_region
          %s297 = sand.u32 %s23, 1
          %s298 = scalar_lea.sflag [#allocation6], %s297
          %s299 = sand.u32 %s59, 1
          %s300 = smul.addr %s299, 8
          %s301 = scalar_lea.vmem [#allocation5], %s300
          %s303 = ssub.s32 128, 128
          %304 = vsyncadd %s298, %s303
          %s305 = smul.addr %s23, 128
          %s306 = scalar_lea.hbm %s1, %s305
          %s308 = sshll.u32 %s301, 4
          %s309 = int_to_ptr.vmem [resolvable:$true] %s308
          %311 = dma.hbm_to_vmem [thread:$0]  %s306, 128, %s309, %s298
        $region44: #{tpu_custom_call.1} parent=35 // pred_fallthru
          _
        // Predicated region
        $region45: #{tpu_custom_call.1} parent=35 // pred_check
          %p312 = pneg %p95
        $region46: #{tpu_custom_call.1} parent=35 // pred_check_branch
          %314 = sbr.rel (%p312) target = $region48
        $region47: #{tpu_custom_call.1} parent=35 // pred_region
          %p315 = scmp.lt.s32.totalorder %s23, 1
          %s316 = scalar_select %p315, %s23, 1
          %s317 = scalar_lea.vmem %s2, %s316
        $region48: #{tpu_custom_call.1} parent=35 // pred_fallthru
          _
      $region36: #{tpu_custom_call.1} parent=5 // pred_fallthru
        _
      %p318 = scmp.le.s32.totalorder 1, %s23
      %p319 = scmp.lt.s32.totalorder %s23, 3
      %p320 = pnand %p318, %p319
      %p321 = pneg %p320
      // Predicated region
      $region49: #{tpu_custom_call.1} parent=5 // pred_check
        _
      $region50: #{tpu_custom_call.1} parent=5 // pred_check_branch
        %323 = sbr.rel (%p320) target = $region52
      $region51: #{tpu_custom_call.1} parent=5 // pred_region
        %s324 = ssub.s32 %s23, 1
        %s325 = sand.u32 %s36, 1
        %s326 = scalar_lea.sflag [#allocation3], %s325
        %s327 = sand.u32 %s36, 1
        %s328 = smul.addr %s327, 8
        %s329 = scalar_lea.vmem [#allocation2], %s328
        // Predicated region
        $region53: #{tpu_custom_call.1} parent=51 // pred_check
          %p330 = pneg %p49
        $region54: #{tpu_custom_call.1} parent=51 // pred_check_branch
          %332 = sbr.rel (%p330) target = $region56
        $region55: #{tpu_custom_call.1} parent=51 // pred_region
          %333 = dma.done %s326, 128
        $region56: #{tpu_custom_call.1} parent=51 // pred_fallthru
          _
        %s334 = sand.u32 %s28, 1
        %s335 = scalar_lea.sflag [#allocation6], %s334
        %s336 = sand.u32 %s62, 1
        %s337 = smul.addr %s336, 8
        %s338 = scalar_lea.vmem [#allocation5], %s337
        // Predicated region
        $region57: #{tpu_custom_call.1} parent=51 // pred_check
          %p339 = pneg %p75
        $region58: #{tpu_custom_call.1} parent=51 // pred_check_branch
          %341 = sbr.rel (%p339) target = $region60
        $region59: #{tpu_custom_call.1} parent=51 // pred_region
          %342 = dma.done %s335, 128
        $region60: #{tpu_custom_call.1} parent=51 // pred_fallthru
          _
        // Predicated region
        $region61: #{tpu_custom_call.1} parent=51 // pred_check
          %p343 = pneg %p143
        $region62: #{tpu_custom_call.1} parent=51 // pred_check_branch
          %345 = sbr.rel (%p343) target = $region64
        $region63: #{tpu_custom_call.1} parent=51 // pred_region
          %346 = dma.done [#allocation6], 512
        $region64: #{tpu_custom_call.1} parent=51 // pred_fallthru
          _
        %s347 = sand.u32 %s36, 1
        %s348 = scalar_lea.sflag [#allocation3], %s347
        %s349 = sand.u32 %s36, 1
        %s350 = smul.addr %s349, 8
        %s351 = scalar_lea.vmem [#allocation2], %s350
        %p352 = pneg %p49
        %p353 = pneg %p46
        %s354 = sand.u32 %s28, 1
        %s355 = scalar_lea.sflag [#allocation6], %s354
        %s356 = sand.u32 %s62, 1
        %s357 = smul.addr %s356, 8
        %s358 = scalar_lea.vmem [#allocation5], %s357
        %p359 = pneg %p75
        %p360 = pneg %p72
        %p361 = scmp.lt.s32.totalorder %s28, 1
        %s362 = scalar_select %p361, %s28, 1
        %s363 = scalar_lea.vmem %s2, %s362
        %p364 = pneg %p101
        %p365 = pneg %p98
        %p366 = pneg %p122
        %p367 = pneg %p119
        %p368 = pneg %p143
        %p369 = pneg %p140
        %p370 = pneg %p164
        %p371 = pneg %p161
        %p372 = pneg %p185
        %p373 = pneg %p182
        %p374 = pneg %p206
        %p375 = pneg %p203
        %p376 = pneg %p232
        %p377 = pneg %p229
        %s378 = sand.u32 %s219, 1
        %s379 = scalar_lea.sflag [#allocation4], %s378
        %s380 = sand.u32 %s219, 1
        %s381 = smul.addr %s380, 4
        %s382 = scalar_lea.vmem [#allocation8], %s381
        %p383 = scmp.lt.s32.totalorder %s28, 1
        %s384 = scalar_select %p383, %s28, 1
        %s385 = scalar_lea.vmem %s2, %s384
        %v386 = vld [vmem:[%s338] sm:$0xff]
        %v387 = vld [vmem:[%s3] sm:$0xff]
        %v388 = vld [vmem:[%s329] sm:$0xff]
        %vm389 = vcmask 261120
        %v391 = vsel %vm389, %v387, 0
        %v394 = vsel %vm389, %v386, 0
        %396 = vmatprep.subr.mxu0 0.0
        %397 = vmatpush1.xpose.msra.mxu0 %v394
        %398 = vmatprep.subr.mxu0 0.0
        %399 = vmatpush1.xpose.msra.mxu0 0.0
        %400 = vmatprep.subr.mxu0 0.0
        %401 = vmatpush1.xpose.msra.mxu0 0.0
        %402 = vmatprep.subr.mxu0 0.0
        %403 = vmatpush1.xpose.msra.mxu0 0.0
        %404 = vmatprep.subr.mxu0 0.0
        %405 = vmatpush1.xpose.msra.mxu0 0.0
        %406 = vmatprep.subr.mxu0 0.0
        %407 = vmatpush1.xpose.msra.mxu0 0.0
        %408 = vmatprep.subr.mxu0 0.0
        %409 = vmatpush1.xpose.msra.mxu0 0.0
        %410 = vmatprep.subr.mxu0 0.0
        %411 = vmatpush1.xpose.msra.mxu0 0.0
        %412 = vmatprep.subr.mxu0 0.0
        %413 = vmatpush1.xpose.msra.mxu0 0.0
        %414 = vmatprep.subr.mxu0 0.0
        %415 = vmatpush1.xpose.msra.mxu0 0.0
        %416 = vmatprep.subr.mxu0 0.0
        %417 = vmatpush1.xpose.msra.mxu0 0.0
        %418 = vmatprep.subr.mxu0 0.0
        %419 = vmatpush1.xpose.msra.mxu0 0.0
        %420 = vmatprep.subr.mxu0 0.0
        %421 = vmatpush1.xpose.msra.mxu0 0.0
        %422 = vmatprep.subr.mxu0 0.0
        %423 = vmatpush1.xpose.msra.mxu0 0.0
        %424 = vmatprep.subr.mxu0 0.0
        %425 = vmatpush1.xpose.msra.mxu0 0.0
        %426 = vmatprep.subr.mxu0 0.0
        %427 = vmatpush1.xpose.msra.mxu0 0.0
        %428 = vmatprep.subr.mxu0 0.0
        %429 = vmatpush1.xpose.msra.mxu0 0.0
        %430 = vmatprep.subr.mxu0 0.0
        %431 = vmatpush1.xpose.msra.mxu0 0.0
        %432 = vmatprep.subr.mxu0 0.0
        %433 = vmatpush1.xpose.msra.mxu0 0.0
        %434 = vmatprep.subr.mxu0 0.0
        %435 = vmatpush1.xpose.msra.mxu0 0.0
        %436 = vmatprep.subr.mxu0 0.0
        %437 = vmatpush1.xpose.msra.mxu0 0.0
        %438 = vmatprep.subr.mxu0 0.0
        %439 = vmatpush1.xpose.msra.mxu0 0.0
        %440 = vmatprep.subr.mxu0 0.0
        %441 = vmatpush1.xpose.msra.mxu0 0.0
        %442 = vmatprep.subr.mxu0 0.0
        %443 = vmatpush1.xpose.msra.mxu0 0.0
        %444 = vmatprep.subr.mxu0 0.0
        %445 = vmatpush1.xpose.msra.mxu0 0.0
        %446 = vmatprep.subr.mxu0 0.0
        %447 = vmatpush1.xpose.msra.mxu0 0.0
        %448 = vmatprep.subr.mxu0 0.0
        %449 = vmatpush1.xpose.msra.mxu0 0.0
        %450 = vmatprep.subr.mxu0 0.0
        %451 = vmatpush1.xpose.msra.mxu0 0.0
        %452 = vmatprep.subr.mxu0 0.0
        %453 = vmatpush1.xpose.msra.mxu0 0.0
        %454 = vmatprep.subr.mxu0 0.0
        %455 = vmatpush1.xpose.msra.mxu0 0.0
        %456 = vmatprep.subr.mxu0 0.0
        %457 = vmatpush1.xpose.msra.mxu0 0.0
        %458 = vmatprep.subr.mxu0 0.0
        %459 = vmatpush1.xpose.msra.mxu0 0.0
        %460 = vmatprep.mubr.f32.mxu0 0.0
        %461 = vmatmul.mubr.f32.gmra.mrb[0].mxu0 %v391
        %v462 = vpop.f32.mrb[0].mxu0
        %v463 = vadd.f32 %v388, %v462
        %v464 = vpop.f32.mrb[0].mxu0
        %465 = vdwg.mxu0
        %v466 = vld [vmem:[%s385] sm:$0x1]
        %v467 = vmul.f32 %v466, -10000.0
        %v469 = vlaneseq
        %v470 = vshrl.u32 %v469, 7
        %v471 = vsub.s32 0, %v470
        %v472 = vrot.slane %v467, %v471
        %v474 = vadd.f32 %v463, %v472
        %vm475 = vcmask 64512
        %v476 = vsel %vm475, %v474, -inf
        %477 = vmax.xlane.f32.xlu0 %v476
        %v478 = vpop.xlane.xlu0 %477
        %v479 = vsub.f32 %v474, %v478
        %v480 = vmul.f32 %v479, 1.442695
        %v481 = vpow.pop %v480
        %v482 = vsel %vm475, %v481, 0.0
        %483 = vadd.xlane.f32.xlu0 %v482
        %v484 = vpop.xlane.xlu0 %483
        %v485 = vrcp.pop %v484
        %v486 = vmul.f32 %v481, %v485
        %v488 = vsel %vm475, %v486, 0
        %490 = vmatprep.subr.mxu0 0.0
        %491 = vmatpush1.msra.mxu0 %v386
        %492 = vmatprep.subr.mxu0 0.0
        %493 = vmatpush1.msra.mxu0 0.0
        %494 = vmatprep.subr.mxu0 0.0
        %495 = vmatpush1.msra.mxu0 0.0
        %496 = vmatprep.subr.mxu0 0.0
        %497 = vmatpush1.msra.mxu0 0.0
        %498 = vmatprep.subr.mxu0 0.0
        %499 = vmatpush1.msra.mxu0 0.0
        %500 = vmatprep.subr.mxu0 0.0
        %501 = vmatpush1.msra.mxu0 0.0
        %502 = vmatprep.subr.mxu0 0.0
        %503 = vmatpush1.msra.mxu0 0.0
        %504 = vmatprep.subr.mxu0 0.0
        %505 = vmatpush1.msra.mxu0 0.0
        %506 = vmatprep.subr.mxu0 0.0
        %507 = vmatpush1.msra.mxu0 0.0
        %508 = vmatprep.subr.mxu0 0.0
        %509 = vmatpush1.msra.mxu0 0.0
        %510 = vmatprep.subr.mxu0 0.0
        %511 = vmatpush1.msra.mxu0 0.0
        %512 = vmatprep.subr.mxu0 0.0
        %513 = vmatpush1.msra.mxu0 0.0
        %514 = vmatprep.subr.mxu0 0.0
        %515 = vmatpush1.msra.mxu0 0.0
        %516 = vmatprep.subr.mxu0 0.0
        %517 = vmatpush1.msra.mxu0 0.0
        %518 = vmatprep.subr.mxu0 0.0
        %519 = vmatpush1.msra.mxu0 0.0
        %520 = vmatprep.subr.mxu0 0.0
        %521 = vmatpush1.msra.mxu0 0.0
        %522 = vmatprep.subr.mxu0 0.0
        %523 = vmatpush1.msra.mxu0 0.0
        %524 = vmatprep.subr.mxu0 0.0
        %525 = vmatpush1.msra.mxu0 0.0
        %526 = vmatprep.subr.mxu0 0.0
        %527 = vmatpush1.msra.mxu0 0.0
        %528 = vmatprep.subr.mxu0 0.0
        %529 = vmatpush1.msra.mxu0 0.0
        %530 = vmatprep.subr.mxu0 0.0
        %531 = vmatpush1.msra.mxu0 0.0
        %532 = vmatprep.subr.mxu0 0.0
        %533 = vmatpush1.msra.mxu0 0.0
        %534 = vmatprep.subr.mxu0 0.0
        %535 = vmatpush1.msra.mxu0 0.0
        %536 = vmatprep.subr.mxu0 0.0
        %537 = vmatpush1.msra.mxu0 0.0
        %538 = vmatprep.subr.mxu0 0.0
        %539 = vmatpush1.msra.mxu0 0.0
        %540 = vmatprep.subr.mxu0 0.0
        %541 = vmatpush1.msra.mxu0 0.0
        %542 = vmatprep.subr.mxu0 0.0
        %543 = vmatpush1.msra.mxu0 0.0
        %544 = vmatprep.subr.mxu0 0.0
        %545 = vmatpush1.msra.mxu0 0.0
        %546 = vmatprep.subr.mxu0 0.0
        %547 = vmatpush1.msra.mxu0 0.0
        %548 = vmatprep.subr.mxu0 0.0
        %549 = vmatpush1.msra.mxu0 0.0
        %550 = vmatprep.subr.mxu0 0.0
        %551 = vmatpush1.msra.mxu0 0.0
        %552 = vmatprep.subr.mxu0 0.0
        %553 = vmatpush1.msra.mxu0 0.0
        %554 = vmatprep.mubr.f32.mxu0 0.0
        %555 = vmatmul.mubr.f32.gmra.mrb[0].mxu0 %v488
        %v556 = vpop.f32.mrb[0].mxu0
        %v557 = vadd.f32 0.0, %v556
        %v558 = vpop.f32.mrb[0].mxu0
        %559 = vdwg.mxu0
        %v560 = vld [vmem:[#allocation7] sm:$0xff]
        %v561 = vld [vmem:[#allocation7 + $0x8] sm:$0xff]
        %v562 = vld [vmem:[#allocation7 + $0x10] sm:$0xff]
        %v563 = vld [vmem:[#allocation7 + $0x18] sm:$0xff]
        %v564 = vld [vmem:[%s5] sm:$0x1]
        %v566 = vlaneseq
        %v567 = vshrl.u32 %v566, 7
        %v568 = vsub.s32 0, %v567
        %v569 = vrot.slane %v564, %v568
        %v572 = vsel %vm389, %v557, 0
        %574 = vmatprep.subr.mxu0 0.0
        %575 = vmatpush1.msra.mxu0 %v560
        %576 = vmatprep.subr.mxu0 0.0
        %577 = vmatpush1.msra.mxu0 %v561
        %578 = vmatprep.subr.mxu0 0.0
        %579 = vmatpush1.msra.mxu0 %v562
        %580 = vmatprep.subr.mxu0 0.0
        %581 = vmatpush1.msra.mxu0 %v563
        %582 = vmatprep.subr.mxu0 0.0
        %583 = vmatpush1.msra.mxu0 0.0
        %584 = vmatprep.subr.mxu0 0.0
        %585 = vmatpush1.msra.mxu0 0.0
        %586 = vmatprep.subr.mxu0 0.0
        %587 = vmatpush1.msra.mxu0 0.0
        %588 = vmatprep.subr.mxu0 0.0
        %589 = vmatpush1.msra.mxu0 0.0
        %590 = vmatprep.subr.mxu0 0.0
        %591 = vmatpush1.msra.mxu0 0.0
        %592 = vmatprep.subr.mxu0 0.0
        %593 = vmatpush1.msra.mxu0 0.0
        %594 = vmatprep.subr.mxu0 0.0
        %595 = vmatpush1.msra.mxu0 0.0
        %596 = vmatprep.subr.mxu0 0.0
        %597 = vmatpush1.msra.mxu0 0.0
        %598 = vmatprep.subr.mxu0 0.0
        %599 = vmatpush1.msra.mxu0 0.0
        %600 = vmatprep.subr.mxu0 0.0
        %601 = vmatpush1.msra.mxu0 0.0
        %602 = vmatprep.subr.mxu0 0.0
        %603 = vmatpush1.msra.mxu0 0.0
        %604 = vmatprep.subr.mxu0 0.0
        %605 = vmatpush1.msra.mxu0 0.0
        %606 = vmatprep.subr.mxu0 0.0
        %607 = vmatpush1.msra.mxu0 0.0
        %608 = vmatprep.subr.mxu0 0.0
        %609 = vmatpush1.msra.mxu0 0.0
        %610 = vmatprep.subr.mxu0 0.0
        %611 = vmatpush1.msra.mxu0 0.0
        %612 = vmatprep.subr.mxu0 0.0
        %613 = vmatpush1.msra.mxu0 0.0
        %614 = vmatprep.subr.mxu0 0.0
        %615 = vmatpush1.msra.mxu0 0.0
        %616 = vmatprep.subr.mxu0 0.0
        %617 = vmatpush1.msra.mxu0 0.0
        %618 = vmatprep.subr.mxu0 0.0
        %619 = vmatpush1.msra.mxu0 0.0
        %620 = vmatprep.subr.mxu0 0.0
        %621 = vmatpush1.msra.mxu0 0.0
        %622 = vmatprep.subr.mxu0 0.0
        %623 = vmatpush1.msra.mxu0 0.0
        %624 = vmatprep.subr.mxu0 0.0
        %625 = vmatpush1.msra.mxu0 0.0
        %626 = vmatprep.subr.mxu0 0.0
        %627 = vmatpush1.msra.mxu0 0.0
        %628 = vmatprep.subr.mxu0 0.0
        %629 = vmatpush1.msra.mxu0 0.0
        %630 = vmatprep.subr.mxu0 0.0
        %631 = vmatpush1.msra.mxu0 0.0
        %632 = vmatprep.subr.mxu0 0.0
        %633 = vmatpush1.msra.mxu0 0.0
        %634 = vmatprep.subr.mxu0 0.0
        %635 = vmatpush1.msra.mxu0 0.0
        %636 = vmatprep.subr.mxu0 0.0
        %637 = vmatpush1.msra.mxu0 0.0
        %638 = vmatprep.mubr.f32.mxu0 0.0
        %639 = vmatmul.mubr.f32.gmra.mrb[0].mxu0 %v572
        %v640 = vpop.f32.mrb[0].mxu0
        %v641 = vadd.f32 %v569, %v640
        %v642 = vpop.f32.mrb[0].mxu0
        %643 = vdwg.mxu0
        %v644 = vmul.f32 %v641, 0.5
        %v645 = vmul.f32 %v641, 0.70710677
        %v646 = verf.f32.pop %v645
        %v647 = vadd.f32 %v646, 1.0
        %v648 = vmul.f32 %v644, %v647
        %v649 = vsel %vm389, %v648, 0.0
        %650 = vadd.xlane.f32.xlu0 %v649
        %v651 = vpop.xlane.xlu0 %650
        %v652 = vrcp.pop 32.0
        %v653 = vmul.f32 %v651, %v652
        %v654 = vsub.f32 %v648, %v653
        %v655 = vmul.f32 %v654, %v654
        %v656 = vsel %vm389, %v655, 0.0
        %657 = vadd.xlane.f32.xlu0 %v656
        %v658 = vpop.xlane.xlu0 %657
        %v659 = vmul.f32 %v658, %v652
        %v660 = vadd.f32 %v659, 1e-12
        %v661 = vrsqrt.pop %v660
        %v662 = vmul.f32 %v654, %v661
        %v663 = vld [vmem:[%s6] sm:$0x1]
        %v665 = vlaneseq
        %v666 = vshrl.u32 %v665, 7
        %v667 = vsub.s32 0, %v666
        %v668 = vrot.slane %v663, %v667
        %v670 = vmul.f32 %v662, %v668
        %v671 = vld [vmem:[%s7] sm:$0x1]
        %v673 = vlaneseq
        %v674 = vshrl.u32 %v673, 7
        %v675 = vsub.s32 0, %v674
        %v676 = vrot.slane %v671, %v675
        %v678 = vadd.f32 %v670, %v676
        %v679 = vpack.c.bf16 %v678, %v678
        %vm680 = vcmask 257024
        %681 = vst.msk [vmem:[%s382] sm:$0xf] %vm680, %v679
        %s682 = sand.u32 %s219, 1
        %s683 = scalar_lea.sflag [#allocation4], %s682
        %s684 = sand.u32 %s219, 1
        %s685 = smul.addr %s684, 4
        %s686 = scalar_lea.vmem [#allocation8], %s685
        // Predicated region
        $region65: #{tpu_custom_call.1} parent=51 // pred_check
          %p687 = pneg %p229
        $region66: #{tpu_custom_call.1} parent=51 // pred_check_branch
          %689 = sbr.rel (%p687) target = $region68
        $region67: #{tpu_custom_call.1} parent=51 // pred_region
          %s691 = ssub.s32 64, 64
          %692 = vsyncadd %s683, %s691
          %s693 = smul.addr %s28, 64
          %s694 = scalar_lea.hbm %s8, %s693
          %s696 = sshll.u32 %s686, 4
          %s697 = int_to_ptr.vmem [resolvable:$true] %s696
          %699 = dma.vmem_to_hbm [thread:$0]  %s697, 64, %s694, %s683
        $region68: #{tpu_custom_call.1} parent=51 // pred_fallthru
          _
      $region52: #{tpu_custom_call.1} parent=5 // pred_fallthru
        _
      %p700 = scmp.le.s32.totalorder 2, %s23
      // Predicated region
      $region69: #{tpu_custom_call.1} parent=5 // pred_check
        %p701 = pneg %p700
      $region70: #{tpu_custom_call.1} parent=5 // pred_check_branch
        %703 = sbr.rel (%p701) target = $region72
      $region71: #{tpu_custom_call.1} parent=5 // pred_region
        %s704 = ssub.s32 %s23, 2
        // Predicated region
        $region73: #{tpu_custom_call.1} parent=71 // pred_check
          %p705 = pneg %p235
        $region74: #{tpu_custom_call.1} parent=71 // pred_check_branch
          %707 = sbr.rel (%p705) target = $region76
        $region75: #{tpu_custom_call.1} parent=71 // pred_region
          %s708 = sand.u32 %s220, 1
          %s709 = scalar_lea.sflag [#allocation4], %s708
          %s710 = sand.u32 %s220, 1
          %s711 = smul.addr %s710, 4
          %s712 = scalar_lea.vmem [#allocation8], %s711
          %713 = dma.done %s709, 64
        $region76: #{tpu_custom_call.1} parent=71 // pred_fallthru
          _
      $region72: #{tpu_custom_call.1} parent=5 // pred_fallthru
        _
    $region6: #{tpu_custom_call.1} parent=1 // loop_footer
      %s27 = sadd.s32 1, %s23
    $region7: #{tpu_custom_call.1} parent=1 // loop_footer_branch
      %22 = sbr.rel target = $region3
    $region8: #{tpu_custom_call.1} parent=1 // loop_exit
      _
    %714 = vsyncpa [#allocation3], 1
    %s715 = scalar_lea.sflag [#allocation3], 1
    %716 = vsyncpa %s715, 1
    %717 = vsyncpa [#allocation6], 1
    %s718 = scalar_lea.sflag [#allocation6], 1
    %719 = vsyncpa %s718, 1
    %720 = vsyncpa [#allocation4], 1
    %s721 = scalar_lea.sflag [#allocation4], 1
    %722 = vsyncpa %s721, 1

</llo_original>
